<compile_context>
chip_gen: v7x
topology: tpu7x:2x2x1
jax: 0.10.0
libtpu: 0.0.40
codegen_flags: <defaults>
</compile_context>

<pallas_src>
import functools

import jax
import jax.numpy as jnp
from jax.experimental import pallas as pl
from jax.experimental.pallas import tpu as pltpu


# -----------------------------------------------------------------------------
# Fused head kernel.
#   grid = (batch b, spatial tile s, branch i)   -- branch innermost
#   per step:
#     bf tile        = sigmoid(W_i @ f_tile)          -> written once (NCHW)
#     gf[i]         += spatial sum of f_tile          (finalize: /HW, bnneck)
#     sfi[i]        += spatial sum of bf tile         (VMEM scratch)
#     maxacc         = running max over branches for this (b, s) tile
#     maxsp         += spatial sum of max map (at last branch, no writeback)
#   at the very last (s, i) step for batch b the final_feat fusion is emitted.
# -----------------------------------------------------------------------------
def head_kernel(f_ref, w_ref, bns_ref, bnb_ref,          # inputs
                bf_ref, gf_ref, ff_ref,                  # outputs
                sfi_ref, maxsp_ref, maxacc_ref,          # scratch
                *, inv_hw):
    # f_ref    : (Cin, S_blk)        w_ref    : (n, NC, Cin)  (resident)
    # bns_ref  : (n, Cin, 1)         bnb_ref  : (n, Cin, 1)
    # bf_ref   : (NC, S_blk)         gf_ref   : (n, Cin, 1)   (resident per b)
    # ff_ref   : (Cin, 1)
    # sfi_ref  : (n, NC, 1)          maxsp_ref: (NC, 1)
    # maxacc_ref: (NC, S_blk)        running cross-branch max for this tile
    s = pl.program_id(1)                       # spatial tile (sequential)
    i = pl.program_id(2)                       # branch       (sequential)
    n_sp = pl.num_programs(1)
    n_br = pl.num_programs(2)

    f = f_ref[...]                                               # (Cin, S_blk)
    w = w_ref[i]                                                 # (NC, Cin)
    # 1x1 conv == one MXU matmul (note: if NC < 128 the MXU is mostly padded
    # and the kernel is memory/EUP-bound, which is what the layout optimizes).
    logits = jnp.dot(w, f, preferred_element_type=jnp.float32)
    bf = jax.nn.sigmoid(logits)                                  # (NC, S_blk) f32
    bf_ref[...] = bf.astype(bf_ref.dtype)                        # bf16 store

    # ---- zero per-(b, branch) accumulators at the first spatial tile -------
    @pl.when(s == 0)
    def _():
        gf_ref[i] = jnp.zeros(gf_ref.shape[1:], gf_ref.dtype)
        sfi_ref[i] = jnp.zeros(sfi_ref.shape[1:], sfi_ref.dtype)

    @pl.when((s == 0) & (i == 0))
    def _():
        maxsp_ref[...] = jnp.zeros_like(maxsp_ref)

    # ---- per-branch accumulations (f32) -------------------------------------
    gf_ref[i] += jnp.sum(f, axis=-1, keepdims=True)              # (Cin, 1)
    sfi_ref[i] += jnp.sum(bf, axis=-1, keepdims=True)            # (NC, 1)

    # ---- running cross-branch max for this (b, s) tile ----------------------
    @pl.when(i == 0)
    def _():
        maxacc_ref[...] = bf

    @pl.when((i > 0) & (i < n_br - 1))
    def _():
        maxacc_ref[...] = jnp.maximum(maxacc_ref[...], bf)

    @pl.when(i == n_br - 1)
    def _():
        # Last branch: fold the max into the reduction locally -- skip the dead
        # write-back of the max map (saves one NC*S_blk store + load).
        m = jnp.maximum(maxacc_ref[...], bf)
        maxsp_ref[...] += jnp.sum(m, axis=-1, keepdims=True)

    # ---- bnneck finalize: AdaptiveAvgPool2d(1) + BatchNorm1d(eval) ----------
    @pl.when(s == n_sp - 1)
    def _():
        gf_ref[i] = gf_ref[i] * inv_hw * bns_ref[i] + bnb_ref[i]

    # ---- final_feat fusion at the last (s, i) step for this batch element ---
    @pl.when((s == n_sp - 1) & (i == n_br - 1))
    def _():
        gf = gf_ref[...]                                         # (n, Cin, 1) bnneck'd
        sfi = sfi_ref[...]                                       # (n, NC, 1)
        msp = maxsp_ref[...]                                     # (NC, 1)
        # Exact divides (tiny tensors, once per batch element) -- avoids the
        # compounded approx-reciprocal error flagged in review.
        max_rate = msp / jnp.sum(msp, axis=0, keepdims=True)     # (NC, 1)
        sum_f = jnp.sum(sfi, axis=0)                             # (NC, 1)
        ratio = sfi / sum_f * max_rate                           # (n, NC, 1)
        wgt = jnp.sum(ratio, axis=1, keepdims=True)              # (n, 1, 1)
        ff_ref[...] = jnp.sum(wgt * gf, axis=0).astype(ff_ref.dtype)


# -----------------------------------------------------------------------------
# Generation-aware sizing helpers
# -----------------------------------------------------------------------------
def _tpu_vmem_capacity_bytes():
    default = 128 * 1024 * 1024
    try:
        info = pltpu.get_tpu_info()
    except Exception:
        return default
    for attr in ("vmem_capacity_bytes", "vmem_size_bytes", "vmem_bytes"):
        val = getattr(info, attr, None)
        if val:
            return int(val)
    return default


def _head_vmem_bytes(n, cin, nc, s_blk, bf_itemsize):
    """Rough VMEM footprint of the head kernel for a given spatial block."""
    f_tiles = 2 * cin * s_blk * 4                 # double-buffered f tile
    bf_tiles = 2 * nc * s_blk * bf_itemsize       # double-buffered bf tile
    weights = 2 * n * nc * cin * 4                # resident conv weights (worst case)
    maxacc = nc * s_blk * 4                       # running max tile
    # (…, 1)-shaped columns pad to 128 lanes in VMEM.
    cols = (2 * 2 * n * cin + 2 * n * cin + 2 * cin + n * nc + nc) * 128 * 4
    return f_tiles + bf_tiles + weights + maxacc + cols


def _pick_spatial_block(hw, n, cin, nc, bf_itemsize, vmem_budget):
    """Largest multiple-of-128 tile dividing hw that fits the VMEM budget."""
    if hw < 128 or hw % 128 != 0:
        return hw                                  # full-dim block (correct, vreg-padded)
    # v5e/v6e (>=~96 MiB budget) can amortize with bigger tiles than v7x.
    target = 1024 if vmem_budget >= (90 << 20) else 512
    best = 128
    blk = 128
    while blk <= min(hw, target):
        if hw % blk == 0 and _head_vmem_bytes(n, cin, nc, blk, bf_itemsize) <= int(0.7 * vmem_budget):
            best = blk
        blk += 128
    return best


# -----------------------------------------------------------------------------
# Wrapper
# -----------------------------------------------------------------------------
@functools.partial(jax.jit, static_argnames=("s_blk", "bf_dtype"))
def mainnet_forward(feats_nchw, conv_w, bn_scale, bn_shift,
                    s_blk=None, bf_dtype=jnp.bfloat16):
    """Eval-mode MainNet forward over per-branch backbone feature maps.

    feats_nchw: (branches, B, Cin, H, W)  backbone outputs per branch (NCHW).
    conv_w    : (branches, NC, Cin)       1x1 conv weights (torch (NC,Cin,1,1)).
    bn_scale  : (branches, Cin, 1)        gamma / sqrt(running_var + eps)
    bn_shift  : (branches, Cin, 1)        beta - running_mean * scale
    Returns (final_feat (B,Cin), gf (branches,B,Cin), bf (branches,B,NC,H,W)).

    bf is returned in bfloat16 by default (dominant HBM write halved); all
    internal sigmoid/reduction math stays f32, so gf and final_feat keep f32
    parity with the reference.  Pass bf_dtype=jnp.float32 for exact bf parity.
    """
    n, B, Cin, H, W = feats_nchw.shape
    NC = conv_w.shape[1]
    HW = H * W
    bf_itemsize = jnp.dtype(bf_dtype).itemsize

    # Generation-aware VMEM budget: ~48 MiB on v7x (64 MiB physical),
    # ~96 MiB on v5e/v6e (128 MiB physical) -- never the full capacity.
    vmem_budget = int(0.75 * _tpu_vmem_capacity_bytes())
    if s_blk is None:
        s_blk = _pick_spatial_block(HW, n, Cin, NC, bf_itemsize, vmem_budget)
    assert HW % s_blk == 0, "s_blk must divide H*W"
    num_s = HW // s_blk

    # NCHW with spatial flattened: contiguous reshape, no transpose.
    f = feats_nchw.reshape(n, B, Cin, HW)

    head_bytes = (4 * n * B * Cin * HW                       # f read
                  + bf_itemsize * n * B * NC * HW            # bf write
                  + 4 * (n * NC * Cin + 2 * n * Cin          # weights + bn
                         + n * B * Cin + B * Cin))           # gf + final_feat

    bf, gf, ff = pl.pallas_call(
        functools.partial(head_kernel, inv_hw=1.0 / HW),
        out_shape=(
            jax.ShapeDtypeStruct((n, B, NC, HW), bf_dtype),     # bf (NCHW)
            jax.ShapeDtypeStruct((n, B, Cin, 1), jnp.float32),  # gf (bnneck)
            jax.ShapeDtypeStruct((B, Cin, 1), jnp.float32),     # final_feat
        ),
        grid_spec=pltpu.PrefetchScalarGridSpec(
            num_scalar_prefetch=0,
            # (batch, spatial, branch): batch leads (megacore-parallel on v7x),
            # branch innermost so the cross-branch max needs only one tile.
            grid=(B, num_s, n),
            in_specs=[
                pl.BlockSpec((None, None, Cin, s_blk),
                             lambda b, s, i: (i, b, 0, s)),
                # All branch weights resident (constant block index -> one DMA).
                pl.BlockSpec((n, NC, Cin), lambda b, s, i: (0, 0, 0)),
                pl.BlockSpec((n, Cin, 1), lambda b, s, i: (0, 0, 0)),
                pl.BlockSpec((n, Cin, 1), lambda b, s, i: (0, 0, 0)),
            ],
            out_specs=[
                pl.BlockSpec((None, None, NC, s_blk),
                             lambda b, s, i: (i, b, 0, s)),
                # gf block covers all branches for batch b -> resident across
                # the two inner (arbitrary) axes, written once per (b, i).
                pl.BlockSpec((n, None, Cin, 1), lambda b, s, i: (0, b, 0, 0)),
                pl.BlockSpec((None, Cin, 1), lambda b, s, i: (b, 0, 0)),
            ],
            scratch_shapes=[
                pltpu.VMEM((n, NC, 1), jnp.float32),      # per-branch bf sums
                pltpu.VMEM((NC, 1), jnp.float32),         # sum of cross-branch max
                pltpu.VMEM((NC, s_blk), jnp.float32),     # running max tile
            ],
        ),
        compiler_params=pltpu.CompilerParams(
            dimension_semantics=("parallel", "arbitrary", "arbitrary"),
            vmem_limit_bytes=vmem_budget),
        cost_estimate=pl.CostEstimate(
            flops=2 * n * B * HW * Cin * NC,
            transcendentals=2 * n * B * HW * NC,          # sigmoid = exp + recip
            bytes_accessed=int(head_bytes)),
    )(f, conv_w, bn_scale, bn_shift)

    gf3 = gf[..., 0]                      # (n, B, Cin)
    final_feat = ff[..., 0]               # (B, Cin)
    bf_nchw = bf.reshape(n, B, NC, H, W)  # contiguous split of HW -> (H, W)
    return final_feat, gf3, bf_nchw


# -----------------------------------------------------------------------------
# Plain-JAX reference (mirrors the PyTorch forward, NCHW) for a sanity check.
# -----------------------------------------------------------------------------
def reference_forward(feats_nchw, conv_w, bn_scale, bn_shift):
    n = feats_nchw.shape[0]
    gf_list, bf_list = [], []
    for i in range(n):
        fmap = feats_nchw[i]                                  # (B, Cin, H, W)
        gmean = fmap.mean(axis=(2, 3))                        # gap
        feat = gmean * bn_scale[i, :, 0] + bn_shift[i, :, 0]  # bnneck (eval)
        logits = jnp.einsum("bchw,nc->bnhw", fmap, conv_w[i])  # 1x1 conv
        bf_list.append(jax.nn.sigmoid(logits))
        gf_list.append(feat)
    bf = jnp.stack(bf_list)                                   # (n, B, NC, H, W)
    max_f = bf.max(axis=0)
    sum_f_i = bf.sum(axis=(3, 4))                             # (n, B, NC)
    max_f_rate = max_f.sum(axis=(2, 3)) / max_f.sum(axis=(1, 2, 3))[:, None]
    sum_f = sum_f_i.sum(axis=0)
    final = 0.0
    for i in range(n):
        final = final + ((sum_f_i[i] / sum_f * max_f_rate).sum(axis=1))[:, None] * gf_list[i]
    return final, jnp.stack(gf_list), bf


if __name__ == "__main__":
    branches, B, Cin, H, W, NC = 3, 2, 32, 16, 16, 16
    key = jax.random.PRNGKey(0)
    k_feat, k_w = jax.random.split(key)

    # Per-branch backbone feature maps (stand-in for ResNet output), NCHW.
    feats = jax.random.normal(k_feat, (branches, B, Cin, H, W), jnp.float32)

    # Per-branch 1x1 conv weights (torch shape (NC, Cin, 1, 1) -> (NC, Cin)).
    conv_w = 0.05 * jax.random.normal(k_w, (branches, NC, Cin), jnp.float32)

    # bnneck BatchNorm1d params from weights_init_kaiming + default running
    # stats: gamma=1, beta=0, running_mean=0, running_var=1, eps=1e-5.
    eps = 1e-5
    bn_scale = jnp.full((branches, Cin, 1), 1.0 / jnp.sqrt(1.0 + eps), jnp.float32)
    bn_shift = jnp.zeros((branches, Cin, 1), jnp.float32)

    # s_blk=128 forces 2 spatial tiles so the accumulator / finalize paths are
    # exercised; bf_dtype stays at its bfloat16 default.
    final_feat, gf, bf = mainnet_forward(feats, conv_w, bn_scale, bn_shift,
                                         s_blk=128)
    jax.block_until_ready((final_feat, gf, bf))

    ref_final, ref_gf, ref_bf = reference_forward(feats, conv_w, bn_scale, bn_shift)
    assert final_feat.shape == (B, Cin)
    assert gf.shape == (branches, B, Cin)
    assert bf.shape == (branches, B, NC, H, W)
    # gf and final_feat are computed entirely in f32 -> tight parity.
    assert jnp.allclose(gf, ref_gf, rtol=1e-3, atol=1e-3)
    assert jnp.allclose(final_feat, ref_final, rtol=1e-3, atol=1e-3)
    # bf is returned in bfloat16 (perf review) -> compare at bf16 precision.
    assert jnp.allclose(bf.astype(jnp.float32), ref_bf, rtol=2e-2, atol=4e-3)

    print("KERNEL_OK")
</pallas_src>

<mosaic_0001>
module attributes {stable_mosaic.version = 11 : i64} {
  func.func @head_kernel(%arg0: i32, %arg1: i32, %arg2: i32, %arg3: memref<1x1x32x128xf32, #tpu.memory_space<vmem>>, %arg4: memref<3x16x32xf32, #tpu.memory_space<vmem>>, %arg5: memref<3x32x1xf32, #tpu.memory_space<vmem>>, %arg6: memref<3x32x1xf32, #tpu.memory_space<vmem>>, %arg7: memref<1x1x16x128xbf16, #tpu.memory_space<vmem>>, %arg8: memref<3x1x32x1xf32, #tpu.memory_space<vmem>>, %arg9: memref<1x32x1xf32, #tpu.memory_space<vmem>>, %arg10: memref<3x16x1xf32, #tpu.memory_space<vmem>>, %arg11: memref<16x1xf32, #tpu.memory_space<vmem>>, %arg12: memref<16x128xf32, #tpu.memory_space<vmem>>) attributes {dimension_semantics = [#tpu.dimension_semantics<parallel>, #tpu.dimension_semantics<arbitrary>, #tpu.dimension_semantics<arbitrary>], iteration_bounds = array<i64: 2, 2, 3>, scalar_prefetch = 0 : i64, scratch_operands = 3 : i64, tpu.core_type = #tpu.core_type<tc>, window_params = [{transform_indices = @transform_0, window_bounds = array<i64: 1, 1, 32, 128>}, {pipeline_mode = #tpu.pipeline_mode<synchronous>, transform_indices = @transform_1, window_bounds = array<i64: 3, 16, 32>}, {pipeline_mode = #tpu.pipeline_mode<synchronous>, transform_indices = @transform_2, window_bounds = array<i64: 3, 32, 1>}, {pipeline_mode = #tpu.pipeline_mode<synchronous>, transform_indices = @transform_3, window_bounds = array<i64: 3, 32, 1>}, {transform_indices = @transform_4, window_bounds = array<i64: 1, 1, 16, 128>}, {transform_indices = @transform_5, window_bounds = array<i64: 3, 1, 32, 1>}, {transform_indices = @transform_6, window_bounds = array<i64: 1, 32, 1>}]} {
    %c0 = arith.constant 0 : index
    %c0_0 = arith.constant 0 : index
    %c0_1 = arith.constant 0 : index
    %c0_2 = arith.constant 0 : index
    %0 = vector.load %arg3[%c0, %c0_0, %c0_1, %c0_2] : memref<1x1x32x128xf32, #tpu.memory_space<vmem>>, vector<1x1x32x128xf32>
    %1 = vector.shape_cast %0 : vector<1x1x32x128xf32> to vector<32x128xf32>
    %2 = arith.index_cast %arg2 : i32 to index
    %c0_3 = arith.constant 0 : index
    %c0_4 = arith.constant 0 : index
    %3 = vector.load %arg4[%2, %c0_3, %c0_4] : memref<3x16x32xf32, #tpu.memory_space<vmem>>, vector<1x16x32xf32>
    %4 = vector.shape_cast %3 : vector<1x16x32xf32> to vector<16x32xf32>
    %cst = arith.constant dense<0.000000e+00> : vector<16x128xf32>
    %5 = tpu.matmul %4, %1, %cst {dimension_numbers = #tpu.dot_dimension_numbers<[1], [0], [0], [1], [0, 0, 1, 1], [], []>} : vector<16x32xf32>, vector<32x128xf32>, vector<16x128xf32> -> vector<16x128xf32>
    %6 = arith.negf %5 : vector<16x128xf32>
    %7 = math.exp %6 : vector<16x128xf32>
    %cst_5 = arith.constant 1.000000e+00 : f32
    %8 = vector.broadcast %cst_5 : f32 to vector<16x128xf32>
    %9 = arith.addf %8, %7 : vector<16x128xf32>
    %10 = arith.divf %8, %9 : vector<16x128xf32>
    %11 = arith.truncf %10 : vector<16x128xf32> to vector<16x128xbf16>
    %c0_6 = arith.constant 0 : index
    %c0_7 = arith.constant 0 : index
    %c0_8 = arith.constant 0 : index
    %c0_9 = arith.constant 0 : index
    %12 = vector.load %arg7[%c0_6, %c0_7, %c0_8, %c0_9] : memref<1x1x16x128xbf16, #tpu.memory_space<vmem>>, vector<1x1x16x128xbf16>
    %13 = vector.shape_cast %12 : vector<1x1x16x128xbf16> to vector<16x128xbf16>
    %14 = vector.shape_cast %11 : vector<16x128xbf16> to vector<1x1x16x128xbf16>
    tpu.vector_store %arg7[%c0_6, %c0_7, %c0_8, %c0_9], %14 {strides = array<i32>} : memref<1x1x16x128xbf16, #tpu.memory_space<vmem>>, vector<1x1x16x128xbf16>,
    %c0_i32 = arith.constant 0 : i32
    %15 = arith.cmpi eq, %arg1, %c0_i32 : i32
    %16 = arith.extui %15 : i1 to i32
    %c0_i32_10 = arith.constant 0 : i32
    %17 = arith.cmpi ne, %16, %c0_i32_10 : i32
    scf.if %17 {
      %cst_36 = arith.constant 0.000000e+00 : f32
      %62 = vector.broadcast %cst_36 : f32 to vector<32x1xf32>
      %63 = arith.index_cast %arg2 : i32 to index
      %c0_37 = arith.constant 0 : index
      %c0_38 = arith.constant 0 : index
      %c0_39 = arith.constant 0 : index
      %64 = vector.load %arg8[%63, %c0_37, %c0_38, %c0_39] : memref<3x1x32x1xf32, #tpu.memory_space<vmem>>, vector<1x1x32x1xf32>
      %65 = vector.shape_cast %64 : vector<1x1x32x1xf32> to vector<32x1xf32>
      %66 = vector.shape_cast %62 : vector<32x1xf32> to vector<1x1x32x1xf32>
      tpu.vector_store %arg8[%63, %c0_37, %c0_38, %c0_39], %66 {strides = array<i32>} : memref<3x1x32x1xf32, #tpu.memory_space<vmem>>, vector<1x1x32x1xf32>,
      %cst_40 = arith.constant 0.000000e+00 : f32
      %67 = vector.broadcast %cst_40 : f32 to vector<16x1xf32>
      %68 = arith.index_cast %arg2 : i32 to index
      %c0_41 = arith.constant 0 : index
      %c0_42 = arith.constant 0 : index
      %69 = vector.load %arg10[%68, %c0_41, %c0_42] : memref<3x16x1xf32, #tpu.memory_space<vmem>>, vector<1x16x1xf32>
      %70 = vector.shape_cast %69 : vector<1x16x1xf32> to vector<16x1xf32>
      %71 = vector.shape_cast %67 : vector<16x1xf32> to vector<1x16x1xf32>
      tpu.vector_store %arg10[%68, %c0_41, %c0_42], %71 {strides = array<i32>} : memref<3x16x1xf32, #tpu.memory_space<vmem>>, vector<1x16x1xf32>,
    } else {
    }
    %c0_i32_11 = arith.constant 0 : i32
    %18 = arith.cmpi eq, %arg1, %c0_i32_11 : i32
    %c0_i32_12 = arith.constant 0 : i32
    %19 = arith.cmpi eq, %arg2, %c0_i32_12 : i32
    %20 = arith.andi %18, %19 : i1
    %21 = arith.extui %20 : i1 to i32
    %c0_i32_13 = arith.constant 0 : i32
    %22 = arith.cmpi ne, %21, %c0_i32_13 : i32
    scf.if %22 {
      %cst_36 = arith.constant 0.000000e+00 : f32
      %62 = vector.broadcast %cst_36 : f32 to vector<16x1xf32>
      %c0_37 = arith.constant 0 : index
      %c0_38 = arith.constant 0 : index
      %63 = vector.load %arg11[%c0_37, %c0_38] : memref<16x1xf32, #tpu.memory_space<vmem>>, vector<16x1xf32>
      tpu.vector_store %arg11[%c0_37, %c0_38], %62 {strides = array<i32>} : memref<16x1xf32, #tpu.memory_space<vmem>>, vector<16x1xf32>,
    } else {
    }
    %23 = arith.index_cast %arg2 : i32 to index
    %c0_14 = arith.constant 0 : index
    %c0_15 = arith.constant 0 : index
    %c0_16 = arith.constant 0 : index
    %24 = vector.load %arg8[%23, %c0_14, %c0_15, %c0_16] : memref<3x1x32x1xf32, #tpu.memory_space<vmem>>, vector<1x1x32x1xf32>
    %25 = vector.shape_cast %24 : vector<1x1x32x1xf32> to vector<32x1xf32>
    %cst_17 = arith.constant dense<0.000000e+00> : vector<32xf32>
    %26 = vector.multi_reduction <add>, %1, %cst_17 [1] : vector<32x128xf32> to vector<32xf32>
    %27 = vector.shape_cast %26 : vector<32xf32> to vector<32x1xf32>
    %28 = arith.addf %25, %27 : vector<32x1xf32>
    %29 = arith.index_cast %arg2 : i32 to index
    %c0_18 = arith.constant 0 : index
    %c0_19 = arith.constant 0 : index
    %c0_20 = arith.constant 0 : index
    %30 = vector.load %arg8[%29, %c0_18, %c0_19, %c0_20] : memref<3x1x32x1xf32, #tpu.memory_space<vmem>>, vector<1x1x32x1xf32>
    %31 = vector.shape_cast %30 : vector<1x1x32x1xf32> to vector<32x1xf32>
    %32 = vector.shape_cast %28 : vector<32x1xf32> to vector<1x1x32x1xf32>
    tpu.vector_store %arg8[%29, %c0_18, %c0_19, %c0_20], %32 {strides = array<i32>} : memref<3x1x32x1xf32, #tpu.memory_space<vmem>>, vector<1x1x32x1xf32>,
    %33 = arith.index_cast %arg2 : i32 to index
    %c0_21 = arith.constant 0 : index
    %c0_22 = arith.constant 0 : index
    %34 = vector.load %arg10[%33, %c0_21, %c0_22] : memref<3x16x1xf32, #tpu.memory_space<vmem>>, vector<1x16x1xf32>
    %35 = vector.shape_cast %34 : vector<1x16x1xf32> to vector<16x1xf32>
    %cst_23 = arith.constant dense<0.000000e+00> : vector<16xf32>
    %36 = vector.multi_reduction <add>, %10, %cst_23 [1] : vector<16x128xf32> to vector<16xf32>
    %37 = vector.shape_cast %36 : vector<16xf32> to vector<16x1xf32>
    %38 = arith.addf %35, %37 : vector<16x1xf32>
    %39 = arith.index_cast %arg2 : i32 to index
    %c0_24 = arith.constant 0 : index
    %c0_25 = arith.constant 0 : index
    %40 = vector.load %arg10[%39, %c0_24, %c0_25] : memref<3x16x1xf32, #tpu.memory_space<vmem>>, vector<1x16x1xf32>
    %41 = vector.shape_cast %40 : vector<1x16x1xf32> to vector<16x1xf32>
    %42 = vector.shape_cast %38 : vector<16x1xf32> to vector<1x16x1xf32>
    tpu.vector_store %arg10[%39, %c0_24, %c0_25], %42 {strides = array<i32>} : memref<3x16x1xf32, #tpu.memory_space<vmem>>, vector<1x16x1xf32>,
    %c0_i32_26 = arith.constant 0 : i32
    %43 = arith.cmpi eq, %arg2, %c0_i32_26 : i32
    %44 = arith.extui %43 : i1 to i32
    %c0_i32_27 = arith.constant 0 : i32
    %45 = arith.cmpi ne, %44, %c0_i32_27 : i32
    scf.if %45 {
      %c0_36 = arith.constant 0 : index
      %c0_37 = arith.constant 0 : index
      %62 = vector.load %arg12[%c0_36, %c0_37] : memref<16x128xf32, #tpu.memory_space<vmem>>, vector<16x128xf32>
      tpu.vector_store %arg12[%c0_36, %c0_37], %10 {strides = array<i32>} : memref<16x128xf32, #tpu.memory_space<vmem>>, vector<16x128xf32>,
    } else {
    }
    %c0_i32_28 = arith.constant 0 : i32
    %46 = arith.cmpi sgt, %arg2, %c0_i32_28 : i32
    %c2_i32 = arith.constant 2 : i32
    %47 = arith.cmpi slt, %arg2, %c2_i32 : i32
    %48 = arith.andi %46, %47 : i1
    %49 = arith.extui %48 : i1 to i32
    %c0_i32_29 = arith.constant 0 : i32
    %50 = arith.cmpi ne, %49, %c0_i32_29 : i32
    scf.if %50 {
      %c0_36 = arith.constant 0 : index
      %c0_37 = arith.constant 0 : index
      %62 = vector.load %arg12[%c0_36, %c0_37] : memref<16x128xf32, #tpu.memory_space<vmem>>, vector<16x128xf32>
      %63 = arith.maximumf %62, %10 : vector<16x128xf32>
      %c0_38 = arith.constant 0 : index
      %c0_39 = arith.constant 0 : index
      %64 = vector.load %arg12[%c0_38, %c0_39] : memref<16x128xf32, #tpu.memory_space<vmem>>, vector<16x128xf32>
      tpu.vector_store %arg12[%c0_38, %c0_39], %63 {strides = array<i32>} : memref<16x128xf32, #tpu.memory_space<vmem>>, vector<16x128xf32>,
    } else {
    }
    %c2_i32_30 = arith.constant 2 : i32
    %51 = arith.cmpi eq, %arg2, %c2_i32_30 : i32
    %52 = arith.extui %51 : i1 to i32
    %c0_i32_31 = arith.constant 0 : i32
    %53 = arith.cmpi ne, %52, %c0_i32_31 : i32
    scf.if %53 {
      %c0_36 = arith.constant 0 : index
      %c0_37 = arith.constant 0 : index
      %62 = vector.load %arg12[%c0_36, %c0_37] : memref<16x128xf32, #tpu.memory_space<vmem>>, vector<16x128xf32>
      %63 = arith.maximumf %62, %10 : vector<16x128xf32>
      %c0_38 = arith.constant 0 : index
      %c0_39 = arith.constant 0 : index
      %64 = vector.load %arg11[%c0_38, %c0_39] : memref<16x1xf32, #tpu.memory_space<vmem>>, vector<16x1xf32>
      %cst_40 = arith.constant dense<0.000000e+00> : vector<16xf32>
      %65 = vector.multi_reduction <add>, %63, %cst_40 [1] : vector<16x128xf32> to vector<16xf32>
      %66 = vector.shape_cast %65 : vector<16xf32> to vector<16x1xf32>
      %67 = arith.addf %64, %66 : vector<16x1xf32>
      %c0_41 = arith.constant 0 : index
      %c0_42 = arith.constant 0 : index
      %68 = vector.load %arg11[%c0_41, %c0_42] : memref<16x1xf32, #tpu.memory_space<vmem>>, vector<16x1xf32>
      tpu.vector_store %arg11[%c0_41, %c0_42], %67 {strides = array<i32>} : memref<16x1xf32, #tpu.memory_space<vmem>>, vector<16x1xf32>,
    } else {
    }
    %c1_i32 = arith.constant 1 : i32
    %54 = arith.cmpi eq, %arg1, %c1_i32 : i32
    %55 = arith.extui %54 : i1 to i32
    %c0_i32_32 = arith.constant 0 : i32
    %56 = arith.cmpi ne, %55, %c0_i32_32 : i32
    scf.if %56 {
      %62 = arith.index_cast %arg2 : i32 to index
      %c0_36 = arith.constant 0 : index
      %c0_37 = arith.constant 0 : index
      %c0_38 = arith.constant 0 : index
      %63 = vector.load %arg8[%62, %c0_36, %c0_37, %c0_38] : memref<3x1x32x1xf32, #tpu.memory_space<vmem>>, vector<1x1x32x1xf32>
      %64 = vector.shape_cast %63 : vector<1x1x32x1xf32> to vector<32x1xf32>
      %cst_39 = arith.constant 3.906250e-03 : f32
      %65 = vector.broadcast %cst_39 : f32 to vector<32x1xf32>
      %66 = arith.mulf %64, %65 : vector<32x1xf32>
      %67 = arith.index_cast %arg2 : i32 to index
      %c0_40 = arith.constant 0 : index
      %c0_41 = arith.constant 0 : index
      %68 = vector.load %arg5[%67, %c0_40, %c0_41] : memref<3x32x1xf32, #tpu.memory_space<vmem>>, vector<1x32x1xf32>
      %69 = vector.shape_cast %68 : vector<1x32x1xf32> to vector<32x1xf32>
      %70 = arith.mulf %66, %69 : vector<32x1xf32>
      %71 = arith.index_cast %arg2 : i32 to index
      %c0_42 = arith.constant 0 : index
      %c0_43 = arith.constant 0 : index
      %72 = vector.load %arg6[%71, %c0_42, %c0_43] : memref<3x32x1xf32, #tpu.memory_space<vmem>>, vector<1x32x1xf32>
      %73 = vector.shape_cast %72 : vector<1x32x1xf32> to vector<32x1xf32>
      %74 = arith.addf %70, %73 : vector<32x1xf32>
      %75 = arith.index_cast %arg2 : i32 to index
      %c0_44 = arith.constant 0 : index
      %c0_45 = arith.constant 0 : index
      %c0_46 = arith.constant 0 : index
      %76 = vector.load %arg8[%75, %c0_44, %c0_45, %c0_46] : memref<3x1x32x1xf32, #tpu.memory_space<vmem>>, vector<1x1x32x1xf32>
      %77 = vector.shape_cast %76 : vector<1x1x32x1xf32> to vector<32x1xf32>
      %78 = vector.shape_cast %74 : vector<32x1xf32> to vector<1x1x32x1xf32>
      tpu.vector_store %arg8[%75, %c0_44, %c0_45, %c0_46], %78 {strides = array<i32>} : memref<3x1x32x1xf32, #tpu.memory_space<vmem>>, vector<1x1x32x1xf32>,
    } else {
    }
    %c1_i32_33 = arith.constant 1 : i32
    %57 = arith.cmpi eq, %arg1, %c1_i32_33 : i32
    %c2_i32_34 = arith.constant 2 : i32
    %58 = arith.cmpi eq, %arg2, %c2_i32_34 : i32
    %59 = arith.andi %57, %58 : i1
    %60 = arith.extui %59 : i1 to i32
    %c0_i32_35 = arith.constant 0 : i32
    %61 = arith.cmpi ne, %60, %c0_i32_35 : i32
    scf.if %61 {
      %c0_36 = arith.constant 0 : index
      %c0_37 = arith.constant 0 : index
      %c0_38 = arith.constant 0 : index
      %c0_39 = arith.constant 0 : index
      %62 = vector.load %arg8[%c0_36, %c0_37, %c0_38, %c0_39] : memref<3x1x32x1xf32, #tpu.memory_space<vmem>>, vector<3x1x32x1xf32>
      %63 = vector.shape_cast %62 : vector<3x1x32x1xf32> to vector<3x32x1xf32>
      %c0_40 = arith.constant 0 : index
      %c0_41 = arith.constant 0 : index
      %c0_42 = arith.constant 0 : index
      %64 = vector.load %arg10[%c0_40, %c0_41, %c0_42] : memref<3x16x1xf32, #tpu.memory_space<vmem>>, vector<3x16x1xf32>
      %c0_43 = arith.constant 0 : index
      %c0_44 = arith.constant 0 : index
      %65 = vector.load %arg11[%c0_43, %c0_44] : memref<16x1xf32, #tpu.memory_space<vmem>>, vector<16x1xf32>
      %cst_45 = arith.constant dense<0.000000e+00> : vector<1xf32>
      %66 = vector.multi_reduction <add>, %65, %cst_45 [0] : vector<16x1xf32> to vector<1xf32>
      %67 = vector.shape_cast %66 : vector<1xf32> to vector<1x1xf32>
      %68 = vector.broadcast %67 : vector<1x1xf32> to vector<16x1xf32>
      %69 = arith.divf %65, %68 : vector<16x1xf32>
      %cst_46 = arith.constant dense<0.000000e+00> : vector<16x1xf32>
      %70 = vector.multi_reduction <add>, %64, %cst_46 [0] : vector<3x16x1xf32> to vector<16x1xf32>
      %71 = vector.shape_cast %70 : vector<16x1xf32> to vector<1x16x1xf32>
      %72 = vector.broadcast %71 : vector<1x16x1xf32> to vector<3x16x1xf32>
      %73 = arith.divf %64, %72 : vector<3x16x1xf32>
      %74 = vector.shape_cast %69 : vector<16x1xf32> to vector<1x16x1xf32>
      %75 = vector.broadcast %74 : vector<1x16x1xf32> to vector<3x16x1xf32>
      %76 = arith.mulf %73, %75 : vector<3x16x1xf32>
      %cst_47 = arith.constant dense<0.000000e+00> : vector<3x1xf32>
      %77 = vector.multi_reduction <add>, %76, %cst_47 [1] : vector<3x16x1xf32> to vector<3x1xf32>
      %78 = vector.shape_cast %77 : vector<3x1xf32> to vector<3x1x1xf32>
      %79 = vector.broadcast %78 : vector<3x1x1xf32> to vector<3x32x1xf32>
      %80 = arith.mulf %79, %63 : vector<3x32x1xf32>
      %cst_48 = arith.constant dense<0.000000e+00> : vector<32x1xf32>
      %81 = vector.multi_reduction <add>, %80, %cst_48 [0] : vector<3x32x1xf32> to vector<32x1xf32>
      %c0_49 = arith.constant 0 : index
      %c0_50 = arith.constant 0 : index
      %c0_51 = arith.constant 0 : index
      %82 = vector.load %arg9[%c0_49, %c0_50, %c0_51] : memref<1x32x1xf32, #tpu.memory_space<vmem>>, vector<1x32x1xf32>
      %83 = vector.shape_cast %82 : vector<1x32x1xf32> to vector<32x1xf32>
      %84 = vector.shape_cast %81 : vector<32x1xf32> to vector<1x32x1xf32>
      tpu.vector_store %arg9[%c0_49, %c0_50, %c0_51], %84 {strides = array<i32>} : memref<1x32x1xf32, #tpu.memory_space<vmem>>, vector<1x32x1xf32>,
    } else {
    }
    return
  }
  func.func @transform_0(%arg0: i32, %arg1: i32, %arg2: i32) -> (i32, i32, i32, i32) {
    %c0_i32 = arith.constant 0 : i32
    %c0_i32_0 = arith.constant 0 : i32
    return %arg2, %arg0, %c0_i32, %arg1 : i32, i32, i32, i32
  }
  func.func @transform_1(%arg0: i32, %arg1: i32, %arg2: i32) -> (i32, i32, i32) {
    %c0_i32 = arith.constant 0 : i32
    %c0_i32_0 = arith.constant 0 : i32
    %c0_i32_1 = arith.constant 0 : i32
    %c0_i32_2 = arith.constant 0 : i32
    return %c0_i32, %c0_i32_0, %c0_i32_1 : i32, i32, i32
  }
  func.func @transform_2(%arg0: i32, %arg1: i32, %arg2: i32) -> (i32, i32, i32) {
    %c0_i32 = arith.constant 0 : i32
    %c0_i32_0 = arith.constant 0 : i32
    %c0_i32_1 = arith.constant 0 : i32
    %c0_i32_2 = arith.constant 0 : i32
    return %c0_i32, %c0_i32_0, %c0_i32_1 : i32, i32, i32
  }
  func.func @transform_3(%arg0: i32, %arg1: i32, %arg2: i32) -> (i32, i32, i32) {
    %c0_i32 = arith.constant 0 : i32
    %c0_i32_0 = arith.constant 0 : i32
    %c0_i32_1 = arith.constant 0 : i32
    %c0_i32_2 = arith.constant 0 : i32
    return %c0_i32, %c0_i32_0, %c0_i32_1 : i32, i32, i32
  }
  func.func @transform_4(%arg0: i32, %arg1: i32, %arg2: i32) -> (i32, i32, i32, i32) {
    %c0_i32 = arith.constant 0 : i32
    %c0_i32_0 = arith.constant 0 : i32
    return %arg2, %arg0, %c0_i32, %arg1 : i32, i32, i32, i32
  }
  func.func @transform_5(%arg0: i32, %arg1: i32, %arg2: i32) -> (i32, i32, i32, i32) {
    %c0_i32 = arith.constant 0 : i32
    %c0_i32_0 = arith.constant 0 : i32
    %c0_i32_1 = arith.constant 0 : i32
    %c0_i32_2 = arith.constant 0 : i32
    return %c0_i32, %arg0, %c0_i32_0, %c0_i32_1 : i32, i32, i32, i32
  }
  func.func @transform_6(%arg0: i32, %arg1: i32, %arg2: i32) -> (i32, i32, i32) {
    %c0_i32 = arith.constant 0 : i32
    %c0_i32_0 = arith.constant 0 : i32
    %c0_i32_1 = arith.constant 0 : i32
    return %arg0, %c0_i32, %c0_i32_0 : i32, i32, i32
  }
}

</mosaic_0001>

<llo_original>
// kernel: mainnet_forward.1
$region0: #{mainnet_forward.1}
  #allocation0 [shape = 'u32[]', space=smem, size = 0x4, offset = 0x4, fixed_abs, tag = 'smem constant byte address 0x4 - core index']
  #allocation1 [shape = 'u32[144,128]{1,0:T(1,128)}', space=vmem, size = 0x12000, scoped, tag = 'internal scratch']
  #allocation2 [shape = 'f32[3,16,1]{2,1,0:T(8,128)}', space=vmem, size = 0x6000, scoped, tag = 'scratch operand']
  #allocation3 [shape = 'f32[16,1]{1,0:T(8,128)}', space=vmem, size = 0x2000, scoped, tag = 'scratch operand']
  #allocation4 [shape = 'f32[16,128]{1,0:T(8,128)}', space=vmem, size = 0x2000, scoped, tag = 'scratch operand']
  #allocation17 [shape = 's32[]', space=sflag, size = 0x4, offset = 0, fixed_abs, tag = 'sflag constant byte address 0x0 - dummy sync flag']
  %s0 = inlined_call_operand.hbm [shape: f32[3,2,32,256], index: 0, kind: input, shape index: {}]
  %s1 = inlined_call_operand.hbm [shape: f32[3,16,32], index: 1, kind: input, shape index: {}]
  %s2 = inlined_call_operand.hbm [shape: f32[3,32,1], index: 2, kind: input, shape index: {}]
  %s3 = inlined_call_operand.hbm [shape: f32[3,32,1], index: 3, kind: input, shape index: {}]
  %s4 = inlined_call_operand.hbm [shape: bf16[3,2,16,256], index: 4, kind: output, shape index: {0}]
  %s5 = inlined_call_operand.hbm [shape: f32[3,2,32,1], index: 5, kind: output, shape index: {1}]
  %s6 = inlined_call_operand.hbm [shape: f32[2,32,1], index: 6, kind: output, shape index: {2}]
  %7 = xla_tuple %s4, %s5, %s6
  %s8 = sld [smem:[#allocation0]]
  $region109: #{mainnet_forward.1} parent=0
    _
  %s10 = ssub.s32 1, %s8
  %s11 = scalar_select 0, %s10, %s8
  $region1: #{mainnet_forward.1} parent=0
    #allocation5 [shape = 'u8[32768]{0}', space=vmem, size = 0x8000, scoped, tag = 'input window, operand 0']
    #allocation6 [shape = 's32[2]{0}', space=sflag, size = 0x8, scoped, tag = 'scoped memory for mainnet_forward.1']
    #allocation7 [shape = 's32[2]{0}', space=sflag, size = 0x8, scoped, tag = 'scoped memory for mainnet_forward.1']
    #allocation8 [shape = 'u8[24576]{0}', space=vmem, size = 0x6000, scoped, tag = 'input window, operand 1, single buffered']
    #allocation9 [shape = 's32[1]{0}', space=sflag, size = 0x4, scoped, tag = 'scoped memory for mainnet_forward.1']
    #allocation10 [shape = 'u8[49152]{0}', space=vmem, size = 0xc000, scoped, tag = 'input window, operand 2, single buffered']
    #allocation11 [shape = 'u8[49152]{0}', space=vmem, size = 0xc000, scoped, tag = 'input window, operand 3, single buffered']
    #allocation12 [shape = 's32[1]{0}', space=sflag, size = 0x4, scoped, tag = 'scoped memory for mainnet_forward.1']
    #allocation13 [shape = 'u8[8192]{0}', space=vmem, size = 0x2000, scoped, tag = 'output window, operand 0']
    #allocation14 [shape = 'u8[98304]{0}', space=vmem, size = 0x18000, scoped, tag = 'output window, operand 1']
    #allocation15 [shape = 's32[2]{0}', space=sflag, size = 0x8, scoped, tag = 'scoped memory for mainnet_forward.1']
    #allocation16 [shape = 'u8[32768]{0}', space=vmem, size = 0x8000, scoped, tag = 'output window, operand 2']
    %12 = vsyncpa [#allocation6], 0
    %s13 = scalar_lea.sflag [#allocation6], 1
    %14 = vsyncpa %s13, 0
    %15 = vsyncpa [#allocation9], 0
    %16 = vsyncpa [#allocation12], 0
    %17 = vsyncpa [#allocation7], 0
    %s18 = scalar_lea.sflag [#allocation7], 1
    %19 = vsyncpa %s18, 0
    %20 = vsyncpa [#allocation15], 0
    %s21 = scalar_lea.sflag [#allocation15], 1
    %22 = vsyncpa %s21, 0
    loop: start=0, step=1, limit=14
    $region2: #{mainnet_forward.1} parent=1 // loop_pre_header
      _
    $region3: #{mainnet_forward.1} parent=1 // loop_header
      %s24 = sphi 0, %s28
      %p25 = scmp.ge.s32.totalorder %s24, 14
      %s31 = sphi 0, %s50
      %s32 = sphi 0, %s46
      %s33 = sphi 0, %s42
      %s34 = sphi 0, %s31
      %s35 = sphi 0, %s32
      %s36 = sphi 0, %s33
      %s37 = sphi 0, %s34
      %s38 = sphi 0, %s35
      %s39 = sphi 0, %s36
      %s57 = sphi 0, %s59
      %s60 = sphi 0, %s57
      %s61 = sphi 0, %s60
      %s77 = sphi 0, %s61
      %s81 = sphi 0, %s81
      %s83 = sphi 0, %s81
      %s84 = sphi 0, %s83
      %s98 = sphi 0, %s84
      %s102 = sphi 0, %s102
      %s104 = sphi 0, %s102
      %s105 = sphi 0, %s104
      %s119 = sphi 0, %s105
      %s123 = sphi 0, %s123
      %s125 = sphi 0, %s123
      %s126 = sphi 0, %s125
      %s140 = sphi 0, %s126
      %s150 = sphi 0, %s152
      %s153 = sphi 0, %s150
      %s154 = sphi 0, %s153
      %s170 = sphi 0, %s154
      %s176 = sphi 0, %s178
      %s179 = sphi 0, %s176
      %s180 = sphi 0, %s179
      %s196 = sphi 0, %s180
      %s202 = sphi 0, %s204
      %s205 = sphi 0, %s202
      %s206 = sphi 0, %s205
      %s222 = sphi 0, %s206
    $region4: #{mainnet_forward.1} parent=1 // loop_header_branch
      %27 = sbr.rel (%p25) target = $region8
    $region5: #{mainnet_forward.1} parent=1 // loop_body
      %s29 = ssub.s32 %s24, 1
      %s30 = ssub.s32 %s24, 2
      %s40 = sadd.s32 1, %s33
      %p41 = scmp.ge.s32.totalorder %s40, 3
      %s42 = scalar_select %p41, 0, %s40
      %s43 = sadd.s32 1, %s32
      %s44 = scalar_select %p41, %s43, %s32
      %p45 = scmp.ge.s32.totalorder %s44, 2
      %s46 = scalar_select %p45, 0, %s44
      %s47 = sadd.s32 1, %s31
      %s48 = scalar_select %p45, %s47, %s31
      %p49 = scmp.ge.s32.totalorder %s48, 2
      %s50 = scalar_select %p49, 0, %s48
      %s51 = ssub.s32 %s33, %s42
      %s52 = ssub.s32 %s31, %s50
      %s53 = sor.u32 %s51, %s52
      %s54 = ssub.s32 %s32, %s46
      %s55 = sor.u32 %s53, %s54
      %p56 = scmp.eq.s32.totalorder %s55, 0
      %s58 = sadd.s32 %s57, 1
      %s59 = scalar_select %p56, %s57, %s58
      %p62 = pneg %p56
      %p63 = scmp.eq.s32.totalorder %s24, 11
      %p64 = por %p62, %p63
      %p65 = scmp.ne.s32.totalorder %s57, %s60
      %p66 = scmp.eq.s32.totalorder %s24, 0
      %p67 = por %p65, %p66
      %p68 = scmp.ne.s32.totalorder %s57, %s60
      %p69 = scmp.eq.s32.totalorder %s29, 11
      %p70 = por %p68, %p69
      %p71 = scmp.ne.s32.totalorder %s60, %s61
      %p72 = scmp.eq.s32.totalorder %s29, 0
      %p73 = por %p71, %p72
      %p74 = scmp.ne.s32.totalorder %s60, %s61
      %p75 = scmp.eq.s32.totalorder %s30, 11
      %p76 = por %p74, %p75
      %p78 = scmp.ne.s32.totalorder %s61, %s77
      %p79 = scmp.eq.s32.totalorder %s30, 0
      %p80 = por %p78, %p79
      %s82 = sadd.s32 %s81, 1
      %p85 = scmp.eq.s32.totalorder %s24, 11
      %p86 = scmp.ne.s32.totalorder %s81, %s83
      %p87 = scmp.eq.s32.totalorder %s24, 0
      %p88 = por %p86, %p87
      %p89 = scmp.ne.s32.totalorder %s81, %s83
      %p90 = scmp.eq.s32.totalorder %s29, 11
      %p91 = por %p89, %p90
      %p92 = scmp.ne.s32.totalorder %s83, %s84
      %p93 = scmp.eq.s32.totalorder %s29, 0
      %p94 = por %p92, %p93
      %p95 = scmp.ne.s32.totalorder %s83, %s84
      %p96 = scmp.eq.s32.totalorder %s30, 11
      %p97 = por %p95, %p96
      %p99 = scmp.ne.s32.totalorder %s84, %s98
      %p100 = scmp.eq.s32.totalorder %s30, 0
      %p101 = por %p99, %p100
      %s103 = sadd.s32 %s102, 1
      %p106 = scmp.eq.s32.totalorder %s24, 11
      %p107 = scmp.ne.s32.totalorder %s102, %s104
      %p108 = scmp.eq.s32.totalorder %s24, 0
      %p109 = por %p107, %p108
      %p110 = scmp.ne.s32.totalorder %s102, %s104
      %p111 = scmp.eq.s32.totalorder %s29, 11
      %p112 = por %p110, %p111
      %p113 = scmp.ne.s32.totalorder %s104, %s105
      %p114 = scmp.eq.s32.totalorder %s29, 0
      %p115 = por %p113, %p114
      %p116 = scmp.ne.s32.totalorder %s104, %s105
      %p117 = scmp.eq.s32.totalorder %s30, 11
      %p118 = por %p116, %p117
      %p120 = scmp.ne.s32.totalorder %s105, %s119
      %p121 = scmp.eq.s32.totalorder %s30, 0
      %p122 = por %p120, %p121
      %s124 = sadd.s32 %s123, 1
      %p127 = scmp.eq.s32.totalorder %s24, 11
      %p128 = scmp.ne.s32.totalorder %s123, %s125
      %p129 = scmp.eq.s32.totalorder %s24, 0
      %p130 = por %p128, %p129
      %p131 = scmp.ne.s32.totalorder %s123, %s125
      %p132 = scmp.eq.s32.totalorder %s29, 11
      %p133 = por %p131, %p132
      %p134 = scmp.ne.s32.totalorder %s125, %s126
      %p135 = scmp.eq.s32.totalorder %s29, 0
      %p136 = por %p134, %p135
      %p137 = scmp.ne.s32.totalorder %s125, %s126
      %p138 = scmp.eq.s32.totalorder %s30, 11
      %p139 = por %p137, %p138
      %p141 = scmp.ne.s32.totalorder %s126, %s140
      %p142 = scmp.eq.s32.totalorder %s30, 0
      %p143 = por %p141, %p142
      %s144 = ssub.s32 %s33, %s42
      %s145 = ssub.s32 %s31, %s50
      %s146 = sor.u32 %s144, %s145
      %s147 = ssub.s32 %s32, %s46
      %s148 = sor.u32 %s146, %s147
      %p149 = scmp.eq.s32.totalorder %s148, 0
      %s151 = sadd.s32 %s150, 1
      %s152 = scalar_select %p149, %s150, %s151
      %p155 = pneg %p149
      %p156 = scmp.eq.s32.totalorder %s24, 11
      %p157 = por %p155, %p156
      %p158 = scmp.ne.s32.totalorder %s150, %s153
      %p159 = scmp.eq.s32.totalorder %s24, 0
      %p160 = por %p158, %p159
      %p161 = scmp.ne.s32.totalorder %s150, %s153
      %p162 = scmp.eq.s32.totalorder %s29, 11
      %p163 = por %p161, %p162
      %p164 = scmp.ne.s32.totalorder %s153, %s154
      %p165 = scmp.eq.s32.totalorder %s29, 0
      %p166 = por %p164, %p165
      %p167 = scmp.ne.s32.totalorder %s153, %s154
      %p168 = scmp.eq.s32.totalorder %s30, 11
      %p169 = por %p167, %p168
      %p171 = scmp.ne.s32.totalorder %s154, %s170
      %p172 = scmp.eq.s32.totalorder %s30, 0
      %p173 = por %p171, %p172
      %s174 = ssub.s32 %s31, %s50
      %p175 = scmp.eq.s32.totalorder %s174, 0
      %s177 = sadd.s32 %s176, 1
      %s178 = scalar_select %p175, %s176, %s177
      %p181 = pneg %p175
      %p182 = scmp.eq.s32.totalorder %s24, 11
      %p183 = por %p181, %p182
      %p184 = scmp.ne.s32.totalorder %s176, %s179
      %p185 = scmp.eq.s32.totalorder %s24, 0
      %p186 = por %p184, %p185
      %p187 = scmp.ne.s32.totalorder %s176, %s179
      %p188 = scmp.eq.s32.totalorder %s29, 11
      %p189 = por %p187, %p188
      %p190 = scmp.ne.s32.totalorder %s179, %s180
      %p191 = scmp.eq.s32.totalorder %s29, 0
      %p192 = por %p190, %p191
      %p193 = scmp.ne.s32.totalorder %s179, %s180
      %p194 = scmp.eq.s32.totalorder %s30, 11
      %p195 = por %p193, %p194
      %p197 = scmp.ne.s32.totalorder %s180, %s196
      %p198 = scmp.eq.s32.totalorder %s30, 0
      %p199 = por %p197, %p198
      %s200 = ssub.s32 %s31, %s50
      %p201 = scmp.eq.s32.totalorder %s200, 0
      %s203 = sadd.s32 %s202, 1
      %s204 = scalar_select %p201, %s202, %s203
      %p207 = pneg %p201
      %p208 = scmp.eq.s32.totalorder %s24, 11
      %p209 = por %p207, %p208
      %p210 = scmp.ne.s32.totalorder %s202, %s205
      %p211 = scmp.eq.s32.totalorder %s24, 0
      %p212 = por %p210, %p211
      %p213 = scmp.ne.s32.totalorder %s202, %s205
      %p214 = scmp.eq.s32.totalorder %s29, 11
      %p215 = por %p213, %p214
      %p216 = scmp.ne.s32.totalorder %s205, %s206
      %p217 = scmp.eq.s32.totalorder %s29, 0
      %p218 = por %p216, %p217
      %p219 = scmp.ne.s32.totalorder %s205, %s206
      %p220 = scmp.eq.s32.totalorder %s30, 11
      %p221 = por %p219, %p220
      %p223 = scmp.ne.s32.totalorder %s206, %s222
      %p224 = scmp.eq.s32.totalorder %s30, 0
      %p225 = por %p223, %p224
      %p226 = scmp.le.s32.totalorder 1, %s24
      %p227 = scmp.lt.s32.totalorder %s24, 13
      %p228 = pnand %p226, %p227
      %p229 = pneg %p228
      // Predicated region
      $region9: #{mainnet_forward.1} parent=5 // pred_check
        _
      $region10: #{mainnet_forward.1} parent=5 // pred_check_branch
        %231 = sbr.rel (%p228) target = $region12
      $region11: #{mainnet_forward.1} parent=5 // pred_region
        %s232 = ssub.s32 %s24, 1
        // Predicated region
        $region13: #{mainnet_forward.1} parent=11 // pred_check
          %p233 = pneg %p94
        $region14: #{mainnet_forward.1} parent=11 // pred_check_branch
          %235 = sbr.rel (%p233) target = $region16
        $region15: #{mainnet_forward.1} parent=11 // pred_region
          %s237 = ssub.s32 768, 768
          %238 = vsyncadd [#allocation9], %s237
          %s239 = sshll.u32 [#allocation8], 4
          %s240 = int_to_ptr.vmem [resolvable:$true] %s239
          %245 = dma.hbm_to_vmem [thread:$0]  %s1, 768, %s240, [#allocation9], 128, 128, 8
        $region16: #{mainnet_forward.1} parent=11 // pred_fallthru
          _
        // Predicated region
        $region17: #{mainnet_forward.1} parent=11 // pred_check
          %p246 = pneg %p115
        $region18: #{mainnet_forward.1} parent=11 // pred_check_branch
          %248 = sbr.rel (%p246) target = $region20
        $region19: #{mainnet_forward.1} parent=11 // pred_region
          %s250 = ssub.s32 1536, 1536
          %251 = vsyncadd [#allocation9], %s250
          %s252 = sshll.u32 [#allocation10], 4
          %s253 = int_to_ptr.vmem [resolvable:$true] %s252
          %258 = dma.hbm_to_vmem [thread:$0]  %s2, 1536, %s253, [#allocation9], 128, 128, 8
        $region20: #{mainnet_forward.1} parent=11 // pred_fallthru
          _
        // Predicated region
        $region21: #{mainnet_forward.1} parent=11 // pred_check
          %p259 = pneg %p136
        $region22: #{mainnet_forward.1} parent=11 // pred_check_branch
          %261 = sbr.rel (%p259) target = $region24
        $region23: #{mainnet_forward.1} parent=11 // pred_region
          %s263 = ssub.s32 1536, 1536
          %264 = vsyncadd [#allocation12], %s263
          %s265 = sshll.u32 [#allocation11], 4
          %s266 = int_to_ptr.vmem [resolvable:$true] %s265
          %271 = dma.hbm_to_vmem [thread:$0]  %s3, 1536, %s266, [#allocation12], 128, 128, 8
        $region24: #{mainnet_forward.1} parent=11 // pred_fallthru
          _
      $region12: #{mainnet_forward.1} parent=5 // pred_fallthru
        _
      %p272 = scmp.lt.s32.totalorder %s24, 12
      // Predicated region
      $region25: #{mainnet_forward.1} parent=5 // pred_check
        %p273 = pneg %p272
      $region26: #{mainnet_forward.1} parent=5 // pred_check_branch
        %275 = sbr.rel (%p273) target = $region28
      $region27: #{mainnet_forward.1} parent=5 // pred_region
        // Predicated region
        $region29: #{mainnet_forward.1} parent=27 // pred_check
          %p276 = pneg %p67
        $region30: #{mainnet_forward.1} parent=27 // pred_check_branch
          %278 = sbr.rel (%p276) target = $region32
        $region31: #{mainnet_forward.1} parent=27 // pred_region
          %s279 = sand.u32 %s57, 1
          %s280 = scalar_lea.sflag [#allocation6], %s279
          %s281 = sand.u32 %s57, 1
          %s282 = smul.addr %s281, 32
          %s283 = scalar_lea.vmem [#allocation5], %s282
          %s285 = ssub.s32 512, 512
          %286 = vsyncadd %s280, %s285
          %s287 = smul.addr %s31, 8
          %s288 = sadd.s32 %s32, %s287
          %s289 = smul.addr %s33, 16
          %s290 = sadd.s32 %s288, %s289
          %s291 = smul.addr %s290, 128
          %s292 = scalar_lea.hbm %s0, %s291
          %s293 = sshll.u32 %s283, 4
          %s294 = int_to_ptr.vmem [resolvable:$true] %s293
          %299 = dma.hbm_to_vmem [thread:$0]  %s292, 512, %s294, %s280, 256, 128, 8
        $region32: #{mainnet_forward.1} parent=27 // pred_fallthru
          _
      $region28: #{mainnet_forward.1} parent=5 // pred_fallthru
        _
      %p300 = scmp.le.s32.totalorder 1, %s24
      %p301 = scmp.lt.s32.totalorder %s24, 13
      %p302 = pnand %p300, %p301
      %p303 = pneg %p302
      // Predicated region
      $region33: #{mainnet_forward.1} parent=5 // pred_check
        _
      $region34: #{mainnet_forward.1} parent=5 // pred_check_branch
        %305 = sbr.rel (%p302) target = $region36
      $region35: #{mainnet_forward.1} parent=5 // pred_region
        %s306 = ssub.s32 %s24, 1
        %s307 = sand.u32 %s60, 1
        %s308 = scalar_lea.sflag [#allocation6], %s307
        %s309 = sand.u32 %s60, 1
        %s310 = smul.addr %s309, 32
        %s311 = scalar_lea.vmem [#allocation5], %s310
        // Predicated region
        $region37: #{mainnet_forward.1} parent=35 // pred_check
          %p312 = pneg %p73
        $region38: #{mainnet_forward.1} parent=35 // pred_check_branch
          %314 = sbr.rel (%p312) target = $region40
        $region39: #{mainnet_forward.1} parent=35 // pred_region
          %315 = dma.done %s308, 512
        $region40: #{mainnet_forward.1} parent=35 // pred_fallthru
          _
        // Predicated region
        $region41: #{mainnet_forward.1} parent=35 // pred_check
          %p316 = pneg %p94
        $region42: #{mainnet_forward.1} parent=35 // pred_check_branch
          %318 = sbr.rel (%p316) target = $region44
        $region43: #{mainnet_forward.1} parent=35 // pred_region
          %319 = dma.done [#allocation9], 768
        $region44: #{mainnet_forward.1} parent=35 // pred_fallthru
          _
        // Predicated region
        $region45: #{mainnet_forward.1} parent=35 // pred_check
          %p320 = pneg %p115
        $region46: #{mainnet_forward.1} parent=35 // pred_check_branch
          %322 = sbr.rel (%p320) target = $region48
        $region47: #{mainnet_forward.1} parent=35 // pred_region
          %323 = dma.done [#allocation9], 1536
        $region48: #{mainnet_forward.1} parent=35 // pred_fallthru
          _
        // Predicated region
        $region49: #{mainnet_forward.1} parent=35 // pred_check
          %p324 = pneg %p136
        $region50: #{mainnet_forward.1} parent=35 // pred_check_branch
          %326 = sbr.rel (%p324) target = $region52
        $region51: #{mainnet_forward.1} parent=35 // pred_region
          %327 = dma.done [#allocation12], 1536
        $region52: #{mainnet_forward.1} parent=35 // pred_fallthru
          _
        %s328 = sand.u32 %s60, 1
        %s329 = scalar_lea.sflag [#allocation6], %s328
        %s330 = sand.u32 %s60, 1
        %s331 = smul.addr %s330, 32
        %s332 = scalar_lea.vmem [#allocation5], %s331
        %p333 = pneg %p73
        %p334 = pneg %p70
        %p335 = pneg %p94
        %p336 = pneg %p91
        %p337 = pneg %p115
        %p338 = pneg %p112
        %p339 = pneg %p136
        %p340 = pneg %p133
        %p341 = pneg %p166
        %p342 = pneg %p163
        %s343 = sand.u32 %s153, 1
        %s344 = scalar_lea.sflag [#allocation7], %s343
        %s345 = sand.u32 %s153, 1
        %s346 = smul.addr %s345, 8
        %s347 = scalar_lea.vmem [#allocation13], %s346
        %p348 = pneg %p192
        %p349 = pneg %p189
        %s350 = sand.u32 %s29, 1
        %s351 = scalar_lea.sflag [#allocation15], %s350
        %s352 = sand.u32 %s179, 1
        %s353 = smul.addr %s352, 96
        %s354 = scalar_lea.vmem [#allocation14], %s353
        %p355 = pneg %p218
        %p356 = pneg %p215
        %s357 = sand.u32 %s29, 1
        %s358 = scalar_lea.sflag [#allocation15], %s357
        %s359 = sand.u32 %s205, 1
        %s360 = smul.addr %s359, 32
        %s361 = scalar_lea.vmem [#allocation16], %s360
        %v362 = vld [vmem:[%s311] sm:$0xff]
        %v363 = vld [vmem:[%s311 + $0x8] sm:$0xff]
        %v364 = vld [vmem:[%s311 + $0x10] sm:$0xff]
        %v365 = vld [vmem:[%s311 + $0x18] sm:$0xff]
        %s366 = smul.u32 %s36, 16
        %s367 = scalar_lea.vmem [#allocation8], %s366
        %v368 = vld [vmem:[%s367] sm:$0xff]
        %v369 = vld [vmem:[%s367 + $0x8] sm:$0xff]
        %vm370 = vcmask 261120
        %v372 = vsel %vm370, %v368, 0
        %v375 = vsel %vm370, %v369, 0
        %377 = vmatprep.subr.mxu0 0.0
        %378 = vmatpush1.msra.mxu0 %v362
        %379 = vmatprep.subr.mxu0 0.0
        %380 = vmatpush1.msra.mxu0 %v363
        %381 = vmatprep.subr.mxu0 0.0
        %382 = vmatpush1.msra.mxu0 %v364
        %383 = vmatprep.subr.mxu0 0.0
        %384 = vmatpush1.msra.mxu0 %v365
        %385 = vmatprep.subr.mxu0 0.0
        %386 = vmatpush1.msra.mxu0 0.0
        %387 = vmatprep.subr.mxu0 0.0
        %388 = vmatpush1.msra.mxu0 0.0
        %389 = vmatprep.subr.mxu0 0.0
        %390 = vmatpush1.msra.mxu0 0.0
        %391 = vmatprep.subr.mxu0 0.0
        %392 = vmatpush1.msra.mxu0 0.0
        %393 = vmatprep.subr.mxu0 0.0
        %394 = vmatpush1.msra.mxu0 0.0
        %395 = vmatprep.subr.mxu0 0.0
        %396 = vmatpush1.msra.mxu0 0.0
        %397 = vmatprep.subr.mxu0 0.0
        %398 = vmatpush1.msra.mxu0 0.0
        %399 = vmatprep.subr.mxu0 0.0
        %400 = vmatpush1.msra.mxu0 0.0
        %401 = vmatprep.subr.mxu0 0.0
        %402 = vmatpush1.msra.mxu0 0.0
        %403 = vmatprep.subr.mxu0 0.0
        %404 = vmatpush1.msra.mxu0 0.0
        %405 = vmatprep.subr.mxu0 0.0
        %406 = vmatpush1.msra.mxu0 0.0
        %407 = vmatprep.subr.mxu0 0.0
        %408 = vmatpush1.msra.mxu0 0.0
        %409 = vmatprep.subr.mxu0 0.0
        %410 = vmatpush1.msra.mxu0 0.0
        %411 = vmatprep.subr.mxu0 0.0
        %412 = vmatpush1.msra.mxu0 0.0
        %413 = vmatprep.subr.mxu0 0.0
        %414 = vmatpush1.msra.mxu0 0.0
        %415 = vmatprep.subr.mxu0 0.0
        %416 = vmatpush1.msra.mxu0 0.0
        %417 = vmatprep.subr.mxu0 0.0
        %418 = vmatpush1.msra.mxu0 0.0
        %419 = vmatprep.subr.mxu0 0.0
        %420 = vmatpush1.msra.mxu0 0.0
        %421 = vmatprep.subr.mxu0 0.0
        %422 = vmatpush1.msra.mxu0 0.0
        %423 = vmatprep.subr.mxu0 0.0
        %424 = vmatpush1.msra.mxu0 0.0
        %425 = vmatprep.subr.mxu0 0.0
        %426 = vmatpush1.msra.mxu0 0.0
        %427 = vmatprep.subr.mxu0 0.0
        %428 = vmatpush1.msra.mxu0 0.0
        %429 = vmatprep.subr.mxu0 0.0
        %430 = vmatpush1.msra.mxu0 0.0
        %431 = vmatprep.subr.mxu0 0.0
        %432 = vmatpush1.msra.mxu0 0.0
        %433 = vmatprep.subr.mxu0 0.0
        %434 = vmatpush1.msra.mxu0 0.0
        %435 = vmatprep.subr.mxu0 0.0
        %436 = vmatpush1.msra.mxu0 0.0
        %437 = vmatprep.subr.mxu0 0.0
        %438 = vmatpush1.msra.mxu0 0.0
        %439 = vmatprep.subr.mxu0 0.0
        %440 = vmatpush1.msra.mxu0 0.0
        %441 = vmatprep.mubr.f32.mxu0 0.0
        %442 = vmatmul.mubr.f32.gmra.mrb[0].mxu0 %v372
        %v443 = vpop.f32.mrb[0].mxu0
        %v444 = vadd.f32 0.0, %v443
        %v445 = vpop.f32.mrb[0].mxu0
        %446 = vmatprep.mubr.f32.mxu0 0.0
        %447 = vmatmul.mubr.f32.gmra.mrb[0].mxu0 %v375
        %v448 = vpop.f32.mrb[0].mxu0
        %v449 = vadd.f32 0.0, %v448
        %v450 = vpop.f32.mrb[0].mxu0
        %451 = vdwg.mxu0
        %v452 = vxor.u32 %v444, 2147483648
        %v453 = vxor.u32 %v449, 2147483648
        %v454 = vmul.f32 %v452, 1.442695
        %v455 = vpow.pop %v454
        %v456 = vmul.f32 %v453, 1.442695
        %v457 = vpow.pop %v456
        %v458 = vadd.f32 %v455, 1.0
        %v459 = vadd.f32 %v457, 1.0
        %v460 = vrcp.pop %v458
        %v461 = vmul.f32 1.0, %v460
        %v462 = vrcp.pop %v459
        %v463 = vmul.f32 1.0, %v462
        %v464 = vpack.c.bf16 %v463, %v461
        %v466 = vunpack.c.l.b16 %v464
        %v467 = vunpack.c.h.b16 %v464
        %v468 = vpack.c.b16 %v466, %v466
        %v469 = vpack.c.b16 %v467, %v467
        %472 = vst [vmem:[%s347] sm:$0xf] %v468
        %473 = vst [vmem:[%s347 + $0x4] sm:$0xf] %v469
        %p474 = scmp.eq.s32.totalorder %s35, 0
        // Predicated region
        $region53: #{mainnet_forward.1} parent=35 // pred_check
          %p475 = pneg %p474
        $region54: #{mainnet_forward.1} parent=35 // pred_check_branch
          %477 = sbr.rel (%p475) target = $region56
        $region55: #{mainnet_forward.1} parent=35 // pred_region
          %s478 = smul.u32 %s36, 32
          %s479 = scalar_lea.vmem %s354, %s478 [#allocation14]
          %vm480 = vcmask 7168
          %481 = vst.msk [vmem:[%s479] sm:$0xff] %vm480, 0.0
          %482 = vst.msk [vmem:[%s479 + $0x8] sm:$0xff] %vm480, 0.0
          %483 = vst.msk [vmem:[%s479 + $0x10] sm:$0xff] %vm480, 0.0
          %484 = vst.msk [vmem:[%s479 + $0x18] sm:$0xff] %vm480, 0.0
          %s485 = scalar_lea.vmem [#allocation2], %s366
          %486 = vst.msk [vmem:[%s485] sm:$0xff] %vm480, 0.0
          %487 = vst.msk [vmem:[%s485 + $0x8] sm:$0xff] %vm480, 0.0
        $region56: #{mainnet_forward.1} parent=35 // pred_fallthru
          _
        %p488 = scmp.eq.s32.totalorder %s36, 0
        %p489 = pnand %p474, %p488
        %p490 = pneg %p489
        // Predicated region
        $region57: #{mainnet_forward.1} parent=35 // pred_check
          _
        $region58: #{mainnet_forward.1} parent=35 // pred_check_branch
          %492 = sbr.rel (%p489) target = $region60
        $region59: #{mainnet_forward.1} parent=35 // pred_region
          %vm493 = vcmask 7168
          %494 = vst.msk [vmem:[#allocation3] sm:$0xff] %vm493, 0.0
          %495 = vst.msk [vmem:[#allocation3 + $0x8] sm:$0xff] %vm493, 0.0
        $region60: #{mainnet_forward.1} parent=35 // pred_fallthru
          _
        %s496 = smul.u32 %s36, 32
        %s497 = scalar_lea.vmem %s354, %s496 [#allocation14]
        %v498 = vld [vmem:[%s497] sm:$0xff]
        %v499 = vld [vmem:[%s497 + $0x8] sm:$0xff]
        %v500 = vld [vmem:[%s497 + $0x10] sm:$0xff]
        %v501 = vld [vmem:[%s497 + $0x18] sm:$0xff]
        %502 = vadd.xlane.f32.xlu0 %v362
        %v503 = vpop.xlane.xlu0 %502
        %504 = vadd.xlane.f32.xlu0 %v363
        %v505 = vpop.xlane.xlu0 %504
        %506 = vadd.xlane.f32.xlu0 %v364
        %v507 = vpop.xlane.xlu0 %506
        %508 = vadd.xlane.f32.xlu0 %v365
        %v509 = vpop.xlane.xlu0 %508
        %v510 = vadd.f32 %v498, %v503
        %v511 = vadd.f32 %v499, %v505
        %v512 = vadd.f32 %v500, %v507
        %v513 = vadd.f32 %v501, %v509
        %vm514 = vcmask 7168
        %515 = vst.msk [vmem:[%s497] sm:$0xff] %vm514, %v510
        %516 = vst.msk [vmem:[%s497 + $0x8] sm:$0xff] %vm514, %v511
        %517 = vst.msk [vmem:[%s497 + $0x10] sm:$0xff] %vm514, %v512
        %518 = vst.msk [vmem:[%s497 + $0x18] sm:$0xff] %vm514, %v513
        %s519 = scalar_lea.vmem [#allocation2], %s366
        %v520 = vld [vmem:[%s519] sm:$0xff]
        %v521 = vld [vmem:[%s519 + $0x8] sm:$0xff]
        %522 = vadd.xlane.f32.xlu0 %v461
        %v523 = vpop.xlane.xlu0 %522
        %524 = vadd.xlane.f32.xlu0 %v463
        %v525 = vpop.xlane.xlu0 %524
        %v526 = vadd.f32 %v520, %v523
        %v527 = vadd.f32 %v521, %v525
        %528 = vst.msk [vmem:[%s519] sm:$0xff] %vm514, %v526
        %529 = vst.msk [vmem:[%s519 + $0x8] sm:$0xff] %vm514, %v527
        // Predicated region
        $region61: #{mainnet_forward.1} parent=35 // pred_check
          %p530 = pneg %p488
        $region62: #{mainnet_forward.1} parent=35 // pred_check_branch
          %532 = sbr.rel (%p530) target = $region64
        $region63: #{mainnet_forward.1} parent=35 // pred_region
          %533 = vst [vmem:[#allocation4] sm:$0xff] %v461
          %534 = vst [vmem:[#allocation4 + $0x8] sm:$0xff] %v463
        $region64: #{mainnet_forward.1} parent=35 // pred_fallthru
          _
        %p535 = scmp.gt.s32.totalorder %s36, 0
        %p536 = scmp.lt.s32.totalorder %s36, 2
        %p537 = pnand %p535, %p536
        %p538 = pneg %p537
        // Predicated region
        $region65: #{mainnet_forward.1} parent=35 // pred_check
          _
        $region66: #{mainnet_forward.1} parent=35 // pred_check_branch
          %540 = sbr.rel (%p537) target = $region68
        $region67: #{mainnet_forward.1} parent=35 // pred_region
          %v541 = vld [vmem:[#allocation4] sm:$0xff]
          %v542 = vld [vmem:[#allocation4 + $0x8] sm:$0xff]
          %v543 = vmax.f32 %v541, %v461
          %v544 = vmax.f32 %v542, %v463
          %545 = vst [vmem:[#allocation4] sm:$0xff] %v543
          %546 = vst [vmem:[#allocation4 + $0x8] sm:$0xff] %v544
        $region68: #{mainnet_forward.1} parent=35 // pred_fallthru
          _
        %p547 = scmp.eq.s32.totalorder %s36, 2
        // Predicated region
        $region69: #{mainnet_forward.1} parent=35 // pred_check
          %p548 = pneg %p547
        $region70: #{mainnet_forward.1} parent=35 // pred_check_branch
          %550 = sbr.rel (%p548) target = $region72
        $region71: #{mainnet_forward.1} parent=35 // pred_region
          %v551 = vld [vmem:[#allocation4] sm:$0xff]
          %v552 = vld [vmem:[#allocation4 + $0x8] sm:$0xff]
          %v553 = vmax.f32 %v551, %v461
          %v554 = vmax.f32 %v552, %v463
          %v555 = vld [vmem:[#allocation3] sm:$0xff]
          %v556 = vld [vmem:[#allocation3 + $0x8] sm:$0xff]
          %557 = vadd.xlane.f32.xlu0 %v553
          %v558 = vpop.xlane.xlu0 %557
          %559 = vadd.xlane.f32.xlu0 %v554
          %v560 = vpop.xlane.xlu0 %559
          %v561 = vadd.f32 %v555, %v558
          %v562 = vadd.f32 %v556, %v560
          %563 = vst.msk [vmem:[#allocation3] sm:$0xff] %vm514, %v561
          %564 = vst.msk [vmem:[#allocation3 + $0x8] sm:$0xff] %vm514, %v562
        $region72: #{mainnet_forward.1} parent=35 // pred_fallthru
          _
        %p565 = scmp.eq.s32.totalorder %s35, 1
        // Predicated region
        $region73: #{mainnet_forward.1} parent=35 // pred_check
          %p566 = pneg %p565
        $region74: #{mainnet_forward.1} parent=35 // pred_check_branch
          %568 = sbr.rel (%p566) target = $region76
        $region75: #{mainnet_forward.1} parent=35 // pred_region
          %v569 = vld [vmem:[%s497] sm:$0xff]
          %v570 = vld [vmem:[%s497 + $0x8] sm:$0xff]
          %v571 = vld [vmem:[%s497 + $0x10] sm:$0xff]
          %v572 = vld [vmem:[%s497 + $0x18] sm:$0xff]
          %v573 = vmul.f32 %v569, 0.00390625
          %v574 = vmul.f32 %v570, 0.00390625
          %v575 = vmul.f32 %v571, 0.00390625
          %v576 = vmul.f32 %v572, 0.00390625
          %s577 = scalar_lea.vmem [#allocation10], %s496
          %v578 = vld [vmem:[%s577] sm:$0xff]
          %v579 = vld [vmem:[%s577 + $0x8] sm:$0xff]
          %v580 = vld [vmem:[%s577 + $0x10] sm:$0xff]
          %v581 = vld [vmem:[%s577 + $0x18] sm:$0xff]
          %v582 = vmul.f32 %v573, %v578
          %v583 = vmul.f32 %v574, %v579
          %v584 = vmul.f32 %v575, %v580
          %v585 = vmul.f32 %v576, %v581
          %s586 = scalar_lea.vmem [#allocation11], %s496
          %v587 = vld [vmem:[%s586] sm:$0xff]
          %v588 = vld [vmem:[%s586 + $0x8] sm:$0xff]
          %v589 = vld [vmem:[%s586 + $0x10] sm:$0xff]
          %v590 = vld [vmem:[%s586 + $0x18] sm:$0xff]
          %v591 = vadd.f32 %v582, %v587
          %v592 = vadd.f32 %v583, %v588
          %v593 = vadd.f32 %v584, %v589
          %v594 = vadd.f32 %v585, %v590
          %595 = vst.msk [vmem:[%s497] sm:$0xff] %vm514, %v591
          %596 = vst.msk [vmem:[%s497 + $0x8] sm:$0xff] %vm514, %v592
          %597 = vst.msk [vmem:[%s497 + $0x10] sm:$0xff] %vm514, %v593
          %598 = vst.msk [vmem:[%s497 + $0x18] sm:$0xff] %vm514, %v594
        $region76: #{mainnet_forward.1} parent=35 // pred_fallthru
          _
        %p599 = pnand %p565, %p547
        %p600 = pneg %p599
        // Predicated region
        $region77: #{mainnet_forward.1} parent=35 // pred_check
          _
        $region78: #{mainnet_forward.1} parent=35 // pred_check_branch
          %602 = sbr.rel (%p599) target = $region80
        $region79: #{mainnet_forward.1} parent=35 // pred_region
          %v603 = vld [vmem:[%s354] sm:$0xff]
          %v604 = vld [vmem:[%s354 + $0x8] sm:$0xff]
          %v605 = vld [vmem:[%s354 + $0x10] sm:$0xff]
          %v606 = vld [vmem:[%s354 + $0x18] sm:$0xff]
          %v607 = vld [vmem:[%s354 + $0x20] sm:$0xff]
          %v608 = vld [vmem:[%s354 + $0x28] sm:$0xff]
          %v609 = vld [vmem:[%s354 + $0x30] sm:$0xff]
          %v610 = vld [vmem:[%s354 + $0x38] sm:$0xff]
          %v611 = vld [vmem:[%s354 + $0x40] sm:$0xff]
          %v612 = vld [vmem:[%s354 + $0x48] sm:$0xff]
          %v613 = vld [vmem:[%s354 + $0x50] sm:$0xff]
          %v614 = vld [vmem:[%s354 + $0x58] sm:$0xff]
          %v615 = vld [vmem:[#allocation2] sm:$0xff]
          %v616 = vld [vmem:[#allocation2 + $0x8] sm:$0xff]
          %v617 = vld [vmem:[#allocation2 + $0x10] sm:$0xff]
          %v618 = vld [vmem:[#allocation2 + $0x18] sm:$0xff]
          %v619 = vld [vmem:[#allocation2 + $0x20] sm:$0xff]
          %v620 = vld [vmem:[#allocation2 + $0x28] sm:$0xff]
          %v621 = vld [vmem:[#allocation3] sm:$0xff]
          %v622 = vld [vmem:[#allocation3 + $0x8] sm:$0xff]
          %v623 = vsel %vm514, %v621, 0.0
          %v624 = vsel %vm514, %v622, 0.0
          %v625 = vadd.f32 %v623, %v624
          %v626 = vrot.slane %v625, 4
          %v627 = vadd.f32 %v625, %v626
          %v628 = vrot.slane %v627, 2
          %v629 = vadd.f32 %v627, %v628
          %v630 = vrot.slane %v629, 1
          %v631 = vadd.f32 %v629, %v630
          %v632 = vrcp.pop %v631
          %v633 = vmul.f32 %v621, %v632
          %v634 = vmul.f32 %v622, %v632
          %v635 = vsel %vm514, %v615, 0.0
          %v636 = vsel %vm514, %v617, 0.0
          %v637 = vadd.f32 %v635, %v636
          %v638 = vsel %vm514, %v619, 0.0
          %v639 = vadd.f32 %v637, %v638
          %v640 = vsel %vm514, %v616, 0.0
          %v641 = vsel %vm514, %v618, 0.0
          %v642 = vadd.f32 %v640, %v641
          %v643 = vsel %vm514, %v620, 0.0
          %v644 = vadd.f32 %v642, %v643
          %v645 = vrcp.pop %v639
          %v646 = vmul.f32 %v615, %v645
          %v647 = vrcp.pop %v644
          %v648 = vmul.f32 %v616, %v647
          %v649 = vmul.f32 %v617, %v645
          %v650 = vmul.f32 %v618, %v647
          %v651 = vmul.f32 %v619, %v645
          %v652 = vmul.f32 %v620, %v647
          %v653 = vmul.f32 %v646, %v633
          %v654 = vmul.f32 %v648, %v634
          %v655 = vmul.f32 %v649, %v633
          %v656 = vmul.f32 %v650, %v634
          %v657 = vmul.f32 %v651, %v633
          %v658 = vmul.f32 %v652, %v634
          %v659 = vsel %vm514, %v653, 0.0
          %v660 = vsel %vm514, %v654, 0.0
          %v661 = vadd.f32 %v659, %v660
          %v662 = vrot.slane %v661, 4
          %v663 = vadd.f32 %v661, %v662
          %v664 = vrot.slane %v663, 2
          %v665 = vadd.f32 %v663, %v664
          %v666 = vrot.slane %v665, 1
          %v667 = vadd.f32 %v665, %v666
          %v668 = vsel %vm514, %v655, 0.0
          %v669 = vsel %vm514, %v656, 0.0
          %v670 = vadd.f32 %v668, %v669
          %v671 = vrot.slane %v670, 4
          %v672 = vadd.f32 %v670, %v671
          %v673 = vrot.slane %v672, 2
          %v674 = vadd.f32 %v672, %v673
          %v675 = vrot.slane %v674, 1
          %v676 = vadd.f32 %v674, %v675
          %v677 = vsel %vm514, %v657, 0.0
          %v678 = vsel %vm514, %v658, 0.0
          %v679 = vadd.f32 %v677, %v678
          %v680 = vrot.slane %v679, 4
          %v681 = vadd.f32 %v679, %v680
          %v682 = vrot.slane %v681, 2
          %v683 = vadd.f32 %v681, %v682
          %v684 = vrot.slane %v683, 1
          %v685 = vadd.f32 %v683, %v684
          %v686 = vmul.f32 %v667, %v603
          %v687 = vmul.f32 %v667, %v604
          %v688 = vmul.f32 %v667, %v605
          %v689 = vmul.f32 %v667, %v606
          %v690 = vmul.f32 %v676, %v607
          %v691 = vmul.f32 %v676, %v608
          %v692 = vmul.f32 %v676, %v609
          %v693 = vmul.f32 %v676, %v610
          %v694 = vmul.f32 %v685, %v611
          %v695 = vmul.f32 %v685, %v612
          %v696 = vmul.f32 %v685, %v613
          %v697 = vmul.f32 %v685, %v614
          %v698 = vsel %vm514, %v686, 0.0
          %v699 = vsel %vm514, %v690, 0.0
          %v700 = vadd.f32 %v698, %v699
          %v701 = vsel %vm514, %v694, 0.0
          %v702 = vadd.f32 %v700, %v701
          %v703 = vsel %vm514, %v687, 0.0
          %v704 = vsel %vm514, %v691, 0.0
          %v705 = vadd.f32 %v703, %v704
          %v706 = vsel %vm514, %v695, 0.0
          %v707 = vadd.f32 %v705, %v706
          %v708 = vsel %vm514, %v688, 0.0
          %v709 = vsel %vm514, %v692, 0.0
          %v710 = vadd.f32 %v708, %v709
          %v711 = vsel %vm514, %v696, 0.0
          %v712 = vadd.f32 %v710, %v711
          %v713 = vsel %vm514, %v689, 0.0
          %v714 = vsel %vm514, %v693, 0.0
          %v715 = vadd.f32 %v713, %v714
          %v716 = vsel %vm514, %v697, 0.0
          %v717 = vadd.f32 %v715, %v716
          %718 = vst.msk [vmem:[%s361] sm:$0xff] %vm514, %v702
          %719 = vst.msk [vmem:[%s361 + $0x8] sm:$0xff] %vm514, %v707
          %720 = vst.msk [vmem:[%s361 + $0x10] sm:$0xff] %vm514, %v712
          %721 = vst.msk [vmem:[%s361 + $0x18] sm:$0xff] %vm514, %v717
        $region80: #{mainnet_forward.1} parent=35 // pred_fallthru
          _
        %s722 = sand.u32 %s153, 1
        %s723 = scalar_lea.sflag [#allocation7], %s722
        %s724 = sand.u32 %s153, 1
        %s725 = smul.addr %s724, 8
        %s726 = scalar_lea.vmem [#allocation13], %s725
        %s727 = sand.u32 %s29, 1
        %s728 = scalar_lea.sflag [#allocation15], %s727
        %s729 = sand.u32 %s179, 1
        %s730 = smul.addr %s729, 96
        %s731 = scalar_lea.vmem [#allocation14], %s730
        %s732 = sand.u32 %s29, 1
        %s733 = scalar_lea.sflag [#allocation15], %s732
        %s734 = sand.u32 %s205, 1
        %s735 = smul.addr %s734, 32
        %s736 = scalar_lea.vmem [#allocation16], %s735
        // Predicated region
        $region81: #{mainnet_forward.1} parent=35 // pred_check
          %p737 = pneg %p163
        $region82: #{mainnet_forward.1} parent=35 // pred_check_branch
          %739 = sbr.rel (%p737) target = $region84
        $region83: #{mainnet_forward.1} parent=35 // pred_region
          %s741 = ssub.s32 128, 128
          %742 = vsyncadd %s723, %s741
          %s743 = smul.addr %s34, 4
          %s744 = sadd.s32 %s35, %s743
          %s745 = smul.addr %s36, 8
          %s746 = sadd.s32 %s744, %s745
          %s747 = smul.addr %s746, 64
          %s748 = scalar_lea.hbm %s4, %s747
          %s749 = sshll.u32 %s726, 4
          %s750 = int_to_ptr.vmem [resolvable:$true] %s749
          %755 = dma.vmem_to_hbm [thread:$0]  %s750, 128, %s748, %s723, 64, 128, 4
        $region84: #{mainnet_forward.1} parent=35 // pred_fallthru
          _
        // Predicated region
        $region85: #{mainnet_forward.1} parent=35 // pred_check
          %p756 = pneg %p189
        $region86: #{mainnet_forward.1} parent=35 // pred_check_branch
          %758 = sbr.rel (%p756) target = $region88
        $region87: #{mainnet_forward.1} parent=35 // pred_region
          #allocation18 [shape = 'u32[6]{0}', space=smem, size = 0x18, scoped, tag = 'DMA stride descriptor']
          %s760 = ssub.s32 1536, 1536
          %761 = vsyncadd %s728, %s760
          %s762 = smul.addr %s34, 4
          %s763 = smul.addr %s762, 128
          %s764 = scalar_lea.hbm %s5, %s763
          %s766 = sshll.u32 1, 14
          %s767 = sxor.u32 4294967295, %s766
          %s770 = sshll.u32 7, 18
          %s771 = sxor.u32 4294967295, %s770
          %s772 = sand.u32 0, %s771
          %s774 = sor.u32 %s772, 0
          %s776 = sshll.u32 3, 24
          %s777 = sxor.u32 4294967295, %s776
          %s778 = sand.u32 %s774, %s777
          %s780 = sor.u32 %s778, 0
          %s781 = sshll.u32 %s731, 4
          %s782 = int_to_ptr.vmem [resolvable:$true] %s781
          %788 = sst [smem:[#allocation18]] 512
          %s789 = scalar_lea.smem [#allocation18], 1
          %790 = sst [smem:[%s789]] 1024
          %s791 = scalar_lea.smem [#allocation18], 2
          %792 = sst [smem:[%s791]] 4
          %s793 = scalar_lea.smem [#allocation18], 3
          %794 = sst [smem:[%s793]] 128
          %s795 = scalar_lea.smem [#allocation18], 4
          %796 = sst [smem:[%s795]] 128
          %s797 = scalar_lea.smem [#allocation18], 5
          %798 = sst [smem:[%s797]] 8
          %800 = dma.general %s782, 1536, %s764, %s728, [#allocation17], [#allocation18], %s780, 0
        $region88: #{mainnet_forward.1} parent=35 // pred_fallthru
          _
        // Predicated region
        $region89: #{mainnet_forward.1} parent=35 // pred_check
          %p801 = pneg %p215
        $region90: #{mainnet_forward.1} parent=35 // pred_check_branch
          %803 = sbr.rel (%p801) target = $region92
        $region91: #{mainnet_forward.1} parent=35 // pred_region
          %s805 = ssub.s32 512, 512
          %806 = vsyncadd %s733, %s805
          %s807 = smul.addr %s34, 4
          %s808 = smul.addr %s807, 128
          %s809 = scalar_lea.hbm %s6, %s808
          %s810 = sshll.u32 %s736, 4
          %s811 = int_to_ptr.vmem [resolvable:$true] %s810
          %816 = dma.vmem_to_hbm [thread:$0]  %s811, 512, %s809, %s733, 128, 128, 8
        $region92: #{mainnet_forward.1} parent=35 // pred_fallthru
          _
      $region36: #{mainnet_forward.1} parent=5 // pred_fallthru
        _
      %p817 = scmp.le.s32.totalorder 2, %s24
      // Predicated region
      $region93: #{mainnet_forward.1} parent=5 // pred_check
        %p818 = pneg %p817
      $region94: #{mainnet_forward.1} parent=5 // pred_check_branch
        %820 = sbr.rel (%p818) target = $region96
      $region95: #{mainnet_forward.1} parent=5 // pred_region
        %s821 = ssub.s32 %s24, 2
        // Predicated region
        $region97: #{mainnet_forward.1} parent=95 // pred_check
          %p822 = pneg %p169
        $region98: #{mainnet_forward.1} parent=95 // pred_check_branch
          %824 = sbr.rel (%p822) target = $region100
        $region99: #{mainnet_forward.1} parent=95 // pred_region
          %s825 = sand.u32 %s154, 1
          %s826 = scalar_lea.sflag [#allocation7], %s825
          %s827 = sand.u32 %s154, 1
          %s828 = smul.addr %s827, 8
          %s829 = scalar_lea.vmem [#allocation13], %s828
          %830 = dma.done %s826, 128
        $region100: #{mainnet_forward.1} parent=95 // pred_fallthru
          _
        // Predicated region
        $region101: #{mainnet_forward.1} parent=95 // pred_check
          %p831 = pneg %p195
        $region102: #{mainnet_forward.1} parent=95 // pred_check_branch
          %833 = sbr.rel (%p831) target = $region104
        $region103: #{mainnet_forward.1} parent=95 // pred_region
          %s834 = sand.u32 %s30, 1
          %s835 = scalar_lea.sflag [#allocation15], %s834
          %s836 = sand.u32 %s180, 1
          %s837 = smul.addr %s836, 96
          %s838 = scalar_lea.vmem [#allocation14], %s837
          %839 = dma.done %s835, 1536
        $region104: #{mainnet_forward.1} parent=95 // pred_fallthru
          _
        // Predicated region
        $region105: #{mainnet_forward.1} parent=95 // pred_check
          %p840 = pneg %p221
        $region106: #{mainnet_forward.1} parent=95 // pred_check_branch
          %842 = sbr.rel (%p840) target = $region108
        $region107: #{mainnet_forward.1} parent=95 // pred_region
          %s843 = sand.u32 %s30, 1
          %s844 = scalar_lea.sflag [#allocation15], %s843
          %s845 = sand.u32 %s206, 1
          %s846 = smul.addr %s845, 32
          %s847 = scalar_lea.vmem [#allocation16], %s846
          %848 = dma.done %s844, 512
        $region108: #{mainnet_forward.1} parent=95 // pred_fallthru
          _
      $region96: #{mainnet_forward.1} parent=5 // pred_fallthru
        _
    $region6: #{mainnet_forward.1} parent=1 // loop_footer
      %s28 = sadd.s32 1, %s24
    $region7: #{mainnet_forward.1} parent=1 // loop_footer_branch
      %23 = sbr.rel target = $region3
    $region8: #{mainnet_forward.1} parent=1 // loop_exit
      _
    %849 = vsyncpa [#allocation6], 1
    %s850 = scalar_lea.sflag [#allocation6], 1
    %851 = vsyncpa %s850, 1
    %852 = vsyncpa [#allocation9], 1
    %853 = vsyncpa [#allocation12], 1
    %854 = vsyncpa [#allocation7], 1
    %s855 = scalar_lea.sflag [#allocation7], 1
    %856 = vsyncpa %s855, 1
    %857 = vsyncpa [#allocation15], 1
    %s858 = scalar_lea.sflag [#allocation15], 1
    %859 = vsyncpa %s858, 1

</llo_original>
